<compile_context>
chip_gen: v5e
topology: v5e:2x2
jax: 0.10.0
libtpu: 0.0.40
codegen_flags: <defaults>
</compile_context>

<pallas_src>
import math

import jax
import jax.numpy as jnp
from jax.experimental import pallas as pl
from jax.experimental.pallas import tpu as pltpu

# ----------------------------- configuration -------------------------------
BATCH = 2
SEQ = 8
D_MODEL = 32
NUM_HEADS = 4
D_K = D_MODEL // NUM_HEADS

_NEG_INF = -1e9  # matches PyTorch masked_fill(mask == 0, -1e9)


# ------------------------------- kernel ------------------------------------
def mha_kernel(xq_ref, xk_ref, xv_ref, bias_ref,
               wq_ref, wk_ref, wv_ref, bq_ref, bk_ref, bv_ref,
               wo_ref, bo_ref,
               out_ref, attn_ref):
    """One (batch, head) tile of multi-head attention.

    xq/xk/xv : (1, S, D)      activations for this batch element
    bias     : (1, 1, S, S)   additive mask bias (0 or -1e9)
    wq/wk/wv : (1, D, D_K)    per-head projection weights (scale folded in wq)
    bq/bk/bv : (1, 1, D_K)    per-head projection biases
    wo       : (1, D_K, D)    per-head rows of the output projection
    bo       : (1, D)         output bias (added once, at h == 0)
    out      : (1, S, D)      accumulated over the head grid axis
    attn     : (1, 1, S, S)   attention weights for this (batch, head)
    """
    h = pl.program_id(1)

    x_q = xq_ref[0]          # (S, D)
    x_k = xk_ref[0]
    x_v = xv_ref[0]

    # Per-head projections: (S, D) @ (D, D_K) on the MXU.  The 1/sqrt(d_k)
    # score scale is already folded into wq / bq at trace time.
    q = jnp.dot(x_q, wq_ref[0], preferred_element_type=jnp.float32) + bq_ref[0]
    k = jnp.dot(x_k, wk_ref[0], preferred_element_type=jnp.float32) + bk_ref[0]
    v = jnp.dot(x_v, wv_ref[0], preferred_element_type=jnp.float32) + bv_ref[0]

    # Scores (S, S) with the additive mask bias applied in one add.
    scores = jnp.einsum("qd,kd->qk", q, k,
                        preferred_element_type=jnp.float32) + bias_ref[0, 0]

    # Numerically-stable softmax; exact reciprocal (EUP) so the stored
    # weights are exactly row-normalized.
    m = jnp.max(scores, axis=-1, keepdims=True)
    e = jnp.exp(scores - m)
    w = e * pl.reciprocal(jnp.sum(e, axis=-1, keepdims=True), approx=False)
    attn_ref[0, 0] = w

    # Context for this head and its contribution to the output projection.
    ctx = jnp.dot(w, v, preferred_element_type=jnp.float32)          # (S, D_K)
    contrib = jnp.dot(ctx, wo_ref[0], preferred_element_type=jnp.float32)

    # Accumulate combine_heads + W_o over the head (reduction) grid axis.
    @pl.when(h == 0)
    def _():
        out_ref[0] = contrib + bo_ref[...]

    @pl.when(h != 0)
    def _():
        out_ref[0] += contrib


# ------------------------------- wrapper ------------------------------------
def multi_head_attention(query, key, value, params, mask=None):
    """query/key/value: (B, S, D) float32.  Optional `mask` broadcastable to
    (B, H, S, S); positions where mask == 0 are suppressed (PyTorch
    masked_fill(mask == 0, -1e9) semantics).
    Returns (output (B, S, D), attn_weights (B, H, S, S))."""
    B, S, D = query.shape
    H = NUM_HEADS

    # Additive mask bias in natural (B, H, S, S) layout (0 / -1e9).
    if mask is None:
        bias = jnp.zeros((B, H, S, S), jnp.float32)
    else:
        mask_b = jnp.broadcast_to(mask, (B, H, S, S))
        bias = jnp.where(mask_b == 0, _NEG_INF, 0.0).astype(jnp.float32)

    # Head-major weight layout + scale folding (trace-time, free).
    scale = 1.0 / math.sqrt(D_K)
    wq_h = (params["wq"] * scale).reshape(D, H, D_K).transpose(1, 0, 2)   # (H, D, D_K)
    wk_h = params["wk"].reshape(D, H, D_K).transpose(1, 0, 2)
    wv_h = params["wv"].reshape(D, H, D_K).transpose(1, 0, 2)
    bq_h = (params["bq"] * scale).reshape(1, H, D_K).transpose(1, 0, 2)   # (H, 1, D_K)
    bk_h = params["bk"].reshape(1, H, D_K).transpose(1, 0, 2)
    bv_h = params["bv"].reshape(1, H, D_K).transpose(1, 0, 2)
    wo_h = params["wo"].reshape(H, D_K, D)                                # (H, D_K, D)
    bo = params["bo"]                                                     # (1, D)

    grid = (B, H)
    in_specs = [
        pl.BlockSpec((1, S, D), lambda b, h: (b, 0, 0)),        # xq
        pl.BlockSpec((1, S, D), lambda b, h: (b, 0, 0)),        # xk
        pl.BlockSpec((1, S, D), lambda b, h: (b, 0, 0)),        # xv
        pl.BlockSpec((1, 1, S, S), lambda b, h: (b, h, 0, 0)),  # mask bias
        pl.BlockSpec((1, D, D_K), lambda b, h: (h, 0, 0)),      # wq
        pl.BlockSpec((1, D, D_K), lambda b, h: (h, 0, 0)),      # wk
        pl.BlockSpec((1, D, D_K), lambda b, h: (h, 0, 0)),      # wv
        pl.BlockSpec((1, 1, D_K), lambda b, h: (h, 0, 0)),      # bq
        pl.BlockSpec((1, 1, D_K), lambda b, h: (h, 0, 0)),      # bk
        pl.BlockSpec((1, 1, D_K), lambda b, h: (h, 0, 0)),      # bv
        pl.BlockSpec((1, D_K, D), lambda b, h: (h, 0, 0)),      # wo
        pl.BlockSpec((1, D), lambda b, h: (0, 0)),              # bo
    ]
    out_specs = (
        pl.BlockSpec((1, S, D), lambda b, h: (b, 0, 0)),        # output (acc over h)
        pl.BlockSpec((1, 1, S, S), lambda b, h: (b, h, 0, 0)),  # attn weights
    )
    out_shape = (
        jax.ShapeDtypeStruct((B, S, D), jnp.float32),
        jax.ShapeDtypeStruct((B, H, S, S), jnp.float32),
    )

    fn = pl.pallas_call(
        mha_kernel,
        grid=grid,
        in_specs=in_specs,
        out_specs=out_specs,
        out_shape=out_shape,
        compiler_params=pltpu.CompilerParams(
            dimension_semantics=("parallel", "arbitrary")),
    )
    out, attn = fn(query, key, value, bias,
                   wq_h, wk_h, wv_h, bq_h, bk_h, bv_h, wo_h, bo)
    return out, attn


# --------------------------- pure-JAX reference -----------------------------
def mha_reference(query, key, value, params, mask=None):
    def linear(x, w, b):
        return x @ w + b

    q = linear(query, params["wq"], params["bq"])
    k = linear(key, params["wk"], params["bk"])
    v = linear(value, params["wv"], params["bv"])
    B, S, D = q.shape

    def split(x):
        return x.reshape(B, S, NUM_HEADS, D_K).transpose(0, 2, 1, 3)

    qh, kh, vh = split(q), split(k), split(v)
    scores = jnp.einsum("bhqd,bhkd->bhqk", qh, kh) / math.sqrt(D_K)
    if mask is not None:
        scores = jnp.where(mask == 0, _NEG_INF, scores)
    weights = jax.nn.softmax(scores, axis=-1)
    ctx = jnp.einsum("bhqk,bhkd->bhqd", weights, vh)
    ctx = ctx.transpose(0, 2, 1, 3).reshape(B, S, D)
    return linear(ctx, params["wo"], params["bo"]), weights


# --------------------------------- main -------------------------------------
def init_params(key):
    # Mimic nn.Linear default init: U(-1/sqrt(fan_in), 1/sqrt(fan_in)).
    bound = 1.0 / math.sqrt(D_MODEL)
    keys = jax.random.split(key, 8)
    p = {}
    for i, name in enumerate(["wq", "wk", "wv", "wo"]):
        p[name] = jax.random.uniform(
            keys[i], (D_MODEL, D_MODEL), jnp.float32, -bound, bound)
    for i, name in enumerate(["bq", "bk", "bv", "bo"]):
        p[name] = jax.random.uniform(
            keys[4 + i], (1, D_MODEL), jnp.float32, -bound, bound)
    return p


if __name__ == "__main__":
    root = jax.random.PRNGKey(0)
    k_q, k_k, k_v, k_p = jax.random.split(root, 4)

    query = jax.random.normal(k_q, (BATCH, SEQ, D_MODEL), jnp.float32)
    key_ = jax.random.normal(k_k, (BATCH, SEQ, D_MODEL), jnp.float32)
    value = jax.random.normal(k_v, (BATCH, SEQ, D_MODEL), jnp.float32)
    params = init_params(k_p)

    # Unmasked forward.
    out, attn = multi_head_attention(query, key_, value, params)
    out = jax.block_until_ready(out)
    attn = jax.block_until_ready(attn)
    ref_out, ref_attn = mha_reference(query, key_, value, params)
    assert jnp.allclose(out, ref_out, atol=1e-4, rtol=1e-4), \
        float(jnp.max(jnp.abs(out - ref_out)))
    assert jnp.allclose(attn, ref_attn, atol=1e-4, rtol=1e-4), \
        float(jnp.max(jnp.abs(attn - ref_attn)))

    # Masked forward (causal mask), same kernel — mask is a runtime additive
    # bias input in (B, H, S, S) layout.
    causal = jnp.tril(jnp.ones((SEQ, SEQ), jnp.float32))[None, None]
    out_m, attn_m = multi_head_attention(query, key_, value, params, mask=causal)
    out_m = jax.block_until_ready(out_m)
    attn_m = jax.block_until_ready(attn_m)
    ref_out_m, ref_attn_m = mha_reference(query, key_, value, params, mask=causal)
    assert jnp.allclose(out_m, ref_out_m, atol=1e-4, rtol=1e-4), \
        float(jnp.max(jnp.abs(out_m - ref_out_m)))
    assert jnp.allclose(attn_m, ref_attn_m, atol=1e-4, rtol=1e-4), \
        float(jnp.max(jnp.abs(attn_m - ref_attn_m)))

    print("KERNEL_OK")
</pallas_src>

<mosaic_0001>
module attributes {stable_mosaic.version = 11 : i64} {
  func.func @mha_kernel(%arg0: i32, %arg1: i32, %arg2: memref<1x8x32xf32, #tpu.memory_space<vmem>>, %arg3: memref<1x8x32xf32, #tpu.memory_space<vmem>>, %arg4: memref<1x8x32xf32, #tpu.memory_space<vmem>>, %arg5: memref<1x1x8x8xf32, #tpu.memory_space<vmem>>, %arg6: memref<1x32x8xf32, #tpu.memory_space<vmem>>, %arg7: memref<1x32x8xf32, #tpu.memory_space<vmem>>, %arg8: memref<1x32x8xf32, #tpu.memory_space<vmem>>, %arg9: memref<1x1x8xf32, #tpu.memory_space<vmem>>, %arg10: memref<1x1x8xf32, #tpu.memory_space<vmem>>, %arg11: memref<1x1x8xf32, #tpu.memory_space<vmem>>, %arg12: memref<1x8x32xf32, #tpu.memory_space<vmem>>, %arg13: memref<1x32xf32, #tpu.memory_space<vmem>>, %arg14: memref<1x8x32xf32, #tpu.memory_space<vmem>>, %arg15: memref<1x1x8x8xf32, #tpu.memory_space<vmem>>) attributes {dimension_semantics = [#tpu.dimension_semantics<parallel>, #tpu.dimension_semantics<arbitrary>], iteration_bounds = array<i64: 2, 4>, scalar_prefetch = 0 : i64, scratch_operands = 0 : i64, tpu.core_type = #tpu.core_type<tc>, window_params = [{transform_indices = @transform_0, window_bounds = array<i64: 1, 8, 32>}, {transform_indices = @transform_1, window_bounds = array<i64: 1, 8, 32>}, {transform_indices = @transform_2, window_bounds = array<i64: 1, 8, 32>}, {transform_indices = @transform_3, window_bounds = array<i64: 1, 1, 8, 8>}, {transform_indices = @transform_4, window_bounds = array<i64: 1, 32, 8>}, {transform_indices = @transform_5, window_bounds = array<i64: 1, 32, 8>}, {transform_indices = @transform_6, window_bounds = array<i64: 1, 32, 8>}, {transform_indices = @transform_7, window_bounds = array<i64: 1, 1, 8>}, {transform_indices = @transform_8, window_bounds = array<i64: 1, 1, 8>}, {transform_indices = @transform_9, window_bounds = array<i64: 1, 1, 8>}, {transform_indices = @transform_10, window_bounds = array<i64: 1, 8, 32>}, {pipeline_mode = #tpu.pipeline_mode<synchronous>, transform_indices = @transform_11, window_bounds = array<i64: 1, 32>}, {transform_indices = @transform_12, window_bounds = array<i64: 1, 8, 32>}, {transform_indices = @transform_13, window_bounds = array<i64: 1, 1, 8, 8>}]} {
    %c0 = arith.constant 0 : index
    %c0_0 = arith.constant 0 : index
    %c0_1 = arith.constant 0 : index
    %0 = vector.load %arg2[%c0, %c0_0, %c0_1] : memref<1x8x32xf32, #tpu.memory_space<vmem>>, vector<1x8x32xf32>
    %1 = vector.shape_cast %0 : vector<1x8x32xf32> to vector<8x32xf32>
    %c0_2 = arith.constant 0 : index
    %c0_3 = arith.constant 0 : index
    %c0_4 = arith.constant 0 : index
    %2 = vector.load %arg3[%c0_2, %c0_3, %c0_4] : memref<1x8x32xf32, #tpu.memory_space<vmem>>, vector<1x8x32xf32>
    %3 = vector.shape_cast %2 : vector<1x8x32xf32> to vector<8x32xf32>
    %c0_5 = arith.constant 0 : index
    %c0_6 = arith.constant 0 : index
    %c0_7 = arith.constant 0 : index
    %4 = vector.load %arg4[%c0_5, %c0_6, %c0_7] : memref<1x8x32xf32, #tpu.memory_space<vmem>>, vector<1x8x32xf32>
    %5 = vector.shape_cast %4 : vector<1x8x32xf32> to vector<8x32xf32>
    %c0_8 = arith.constant 0 : index
    %c0_9 = arith.constant 0 : index
    %c0_10 = arith.constant 0 : index
    %6 = vector.load %arg6[%c0_8, %c0_9, %c0_10] : memref<1x32x8xf32, #tpu.memory_space<vmem>>, vector<1x32x8xf32>
    %7 = vector.shape_cast %6 : vector<1x32x8xf32> to vector<32x8xf32>
    %cst = arith.constant dense<0.000000e+00> : vector<8x8xf32>
    %8 = tpu.matmul %1, %7, %cst {dimension_numbers = #tpu.dot_dimension_numbers<[1], [0], [0], [1], [0, 0, 1, 1], [], []>} : vector<8x32xf32>, vector<32x8xf32>, vector<8x8xf32> -> vector<8x8xf32>
    %c0_11 = arith.constant 0 : index
    %c0_12 = arith.constant 0 : index
    %c0_13 = arith.constant 0 : index
    %9 = vector.load %arg9[%c0_11, %c0_12, %c0_13] : memref<1x1x8xf32, #tpu.memory_space<vmem>>, vector<1x1x8xf32>
    %10 = vector.shape_cast %9 : vector<1x1x8xf32> to vector<1x8xf32>
    %11 = vector.broadcast %10 : vector<1x8xf32> to vector<8x8xf32>
    %12 = arith.addf %8, %11 : vector<8x8xf32>
    %c0_14 = arith.constant 0 : index
    %c0_15 = arith.constant 0 : index
    %c0_16 = arith.constant 0 : index
    %13 = vector.load %arg7[%c0_14, %c0_15, %c0_16] : memref<1x32x8xf32, #tpu.memory_space<vmem>>, vector<1x32x8xf32>
    %14 = vector.shape_cast %13 : vector<1x32x8xf32> to vector<32x8xf32>
    %cst_17 = arith.constant dense<0.000000e+00> : vector<8x8xf32>
    %15 = tpu.matmul %3, %14, %cst_17 {dimension_numbers = #tpu.dot_dimension_numbers<[1], [0], [0], [1], [0, 0, 1, 1], [], []>} : vector<8x32xf32>, vector<32x8xf32>, vector<8x8xf32> -> vector<8x8xf32>
    %c0_18 = arith.constant 0 : index
    %c0_19 = arith.constant 0 : index
    %c0_20 = arith.constant 0 : index
    %16 = vector.load %arg10[%c0_18, %c0_19, %c0_20] : memref<1x1x8xf32, #tpu.memory_space<vmem>>, vector<1x1x8xf32>
    %17 = vector.shape_cast %16 : vector<1x1x8xf32> to vector<1x8xf32>
    %18 = vector.broadcast %17 : vector<1x8xf32> to vector<8x8xf32>
    %19 = arith.addf %15, %18 : vector<8x8xf32>
    %c0_21 = arith.constant 0 : index
    %c0_22 = arith.constant 0 : index
    %c0_23 = arith.constant 0 : index
    %20 = vector.load %arg8[%c0_21, %c0_22, %c0_23] : memref<1x32x8xf32, #tpu.memory_space<vmem>>, vector<1x32x8xf32>
    %21 = vector.shape_cast %20 : vector<1x32x8xf32> to vector<32x8xf32>
    %cst_24 = arith.constant dense<0.000000e+00> : vector<8x8xf32>
    %22 = tpu.matmul %5, %21, %cst_24 {dimension_numbers = #tpu.dot_dimension_numbers<[1], [0], [0], [1], [0, 0, 1, 1], [], []>} : vector<8x32xf32>, vector<32x8xf32>, vector<8x8xf32> -> vector<8x8xf32>
    %c0_25 = arith.constant 0 : index
    %c0_26 = arith.constant 0 : index
    %c0_27 = arith.constant 0 : index
    %23 = vector.load %arg11[%c0_25, %c0_26, %c0_27] : memref<1x1x8xf32, #tpu.memory_space<vmem>>, vector<1x1x8xf32>
    %24 = vector.shape_cast %23 : vector<1x1x8xf32> to vector<1x8xf32>
    %25 = vector.broadcast %24 : vector<1x8xf32> to vector<8x8xf32>
    %26 = arith.addf %22, %25 : vector<8x8xf32>
    "tpu.trace_start"() <{level = 10 : i32, message = "qd,kd->qk"}> : () -> ()
    %cst_28 = arith.constant dense<0.000000e+00> : vector<8x8xf32>
    %27 = tpu.matmul %12, %19, %cst_28 {dimension_numbers = #tpu.dot_dimension_numbers<[1], [1], [0], [0], [0, 0, 1, 0], [], []>} : vector<8x8xf32>, vector<8x8xf32>, vector<8x8xf32> -> vector<8x8xf32>
    "tpu.trace_stop"() : () -> ()
    %c0_29 = arith.constant 0 : index
    %c0_30 = arith.constant 0 : index
    %c0_31 = arith.constant 0 : index
    %c0_32 = arith.constant 0 : index
    %28 = vector.load %arg5[%c0_29, %c0_30, %c0_31, %c0_32] : memref<1x1x8x8xf32, #tpu.memory_space<vmem>>, vector<1x1x8x8xf32>
    %29 = vector.shape_cast %28 : vector<1x1x8x8xf32> to vector<8x8xf32>
    %30 = arith.addf %27, %29 : vector<8x8xf32>
    %cst_33 = arith.constant dense<0xFF800000> : vector<8xf32>
    %31 = vector.multi_reduction <maximumf>, %30, %cst_33 [1] : vector<8x8xf32> to vector<8xf32>
    %32 = vector.shape_cast %31 : vector<8xf32> to vector<8x1xf32>
    %33 = vector.broadcast %32 : vector<8x1xf32> to vector<8x8xf32>
    %34 = arith.subf %30, %33 : vector<8x8xf32>
    %35 = math.exp %34 : vector<8x8xf32>
    %cst_34 = arith.constant dense<0.000000e+00> : vector<8xf32>
    %36 = vector.multi_reduction <add>, %35, %cst_34 [1] : vector<8x8xf32> to vector<8xf32>
    %37 = vector.shape_cast %36 : vector<8xf32> to vector<8x1xf32>
    %38 = tpu.reciprocal %37 : vector<8x1xf32> -> vector<8x1xf32>
    %39 = vector.broadcast %38 : vector<8x1xf32> to vector<8x8xf32>
    %40 = arith.mulf %35, %39 : vector<8x8xf32>
    %c0_35 = arith.constant 0 : index
    %c0_36 = arith.constant 0 : index
    %c0_37 = arith.constant 0 : index
    %c0_38 = arith.constant 0 : index
    %41 = vector.load %arg15[%c0_35, %c0_36, %c0_37, %c0_38] : memref<1x1x8x8xf32, #tpu.memory_space<vmem>>, vector<1x1x8x8xf32>
    %42 = vector.shape_cast %41 : vector<1x1x8x8xf32> to vector<8x8xf32>
    %43 = vector.shape_cast %40 : vector<8x8xf32> to vector<1x1x8x8xf32>
    tpu.vector_store %arg15[%c0_35, %c0_36, %c0_37, %c0_38], %43 {strides = array<i32>} : memref<1x1x8x8xf32, #tpu.memory_space<vmem>>, vector<1x1x8x8xf32>,
    %cst_39 = arith.constant dense<0.000000e+00> : vector<8x8xf32>
    %44 = tpu.matmul %40, %26, %cst_39 {dimension_numbers = #tpu.dot_dimension_numbers<[1], [0], [0], [1], [0, 0, 1, 1], [], []>} : vector<8x8xf32>, vector<8x8xf32>, vector<8x8xf32> -> vector<8x8xf32>
    %c0_40 = arith.constant 0 : index
    %c0_41 = arith.constant 0 : index
    %c0_42 = arith.constant 0 : index
    %45 = vector.load %arg12[%c0_40, %c0_41, %c0_42] : memref<1x8x32xf32, #tpu.memory_space<vmem>>, vector<1x8x32xf32>
    %46 = vector.shape_cast %45 : vector<1x8x32xf32> to vector<8x32xf32>
    %cst_43 = arith.constant dense<0.000000e+00> : vector<8x32xf32>
    %47 = tpu.matmul %44, %46, %cst_43 {dimension_numbers = #tpu.dot_dimension_numbers<[1], [0], [0], [1], [0, 0, 1, 1], [], []>} : vector<8x8xf32>, vector<8x32xf32>, vector<8x32xf32> -> vector<8x32xf32>
    %c0_i32 = arith.constant 0 : i32
    %48 = arith.cmpi eq, %arg1, %c0_i32 : i32
    %49 = arith.extui %48 : i1 to i32
    %c0_i32_44 = arith.constant 0 : i32
    %50 = arith.cmpi ne, %49, %c0_i32_44 : i32
    scf.if %50 {
      %c0_47 = arith.constant 0 : index
      %c0_48 = arith.constant 0 : index
      %54 = vector.load %arg13[%c0_47, %c0_48] : memref<1x32xf32, #tpu.memory_space<vmem>>, vector<1x32xf32>
      %55 = vector.broadcast %54 : vector<1x32xf32> to vector<8x32xf32>
      %56 = arith.addf %47, %55 : vector<8x32xf32>
      %c0_49 = arith.constant 0 : index
      %c0_50 = arith.constant 0 : index
      %c0_51 = arith.constant 0 : index
      %57 = vector.load %arg14[%c0_49, %c0_50, %c0_51] : memref<1x8x32xf32, #tpu.memory_space<vmem>>, vector<1x8x32xf32>
      %58 = vector.shape_cast %57 : vector<1x8x32xf32> to vector<8x32xf32>
      %59 = vector.shape_cast %56 : vector<8x32xf32> to vector<1x8x32xf32>
      tpu.vector_store %arg14[%c0_49, %c0_50, %c0_51], %59 {strides = array<i32>} : memref<1x8x32xf32, #tpu.memory_space<vmem>>, vector<1x8x32xf32>,
    } else {
    }
    %c0_i32_45 = arith.constant 0 : i32
    %51 = arith.cmpi ne, %arg1, %c0_i32_45 : i32
    %52 = arith.extui %51 : i1 to i32
    %c0_i32_46 = arith.constant 0 : i32
    %53 = arith.cmpi ne, %52, %c0_i32_46 : i32
    scf.if %53 {
      %c0_47 = arith.constant 0 : index
      %c0_48 = arith.constant 0 : index
      %c0_49 = arith.constant 0 : index
      %54 = vector.load %arg14[%c0_47, %c0_48, %c0_49] : memref<1x8x32xf32, #tpu.memory_space<vmem>>, vector<1x8x32xf32>
      %55 = vector.shape_cast %54 : vector<1x8x32xf32> to vector<8x32xf32>
      %56 = arith.addf %55, %47 : vector<8x32xf32>
      %c0_50 = arith.constant 0 : index
      %c0_51 = arith.constant 0 : index
      %c0_52 = arith.constant 0 : index
      %57 = vector.load %arg14[%c0_50, %c0_51, %c0_52] : memref<1x8x32xf32, #tpu.memory_space<vmem>>, vector<1x8x32xf32>
      %58 = vector.shape_cast %57 : vector<1x8x32xf32> to vector<8x32xf32>
      %59 = vector.shape_cast %56 : vector<8x32xf32> to vector<1x8x32xf32>
      tpu.vector_store %arg14[%c0_50, %c0_51, %c0_52], %59 {strides = array<i32>} : memref<1x8x32xf32, #tpu.memory_space<vmem>>, vector<1x8x32xf32>,
    } else {
    }
    return
  }
  func.func @transform_0(%arg0: i32, %arg1: i32) -> (i32, i32, i32) {
    %c0_i32 = arith.constant 0 : i32
    %c0_i32_0 = arith.constant 0 : i32
    %c0_i32_1 = arith.constant 0 : i32
    return %arg0, %c0_i32, %c0_i32_0 : i32, i32, i32
  }
  func.func @transform_1(%arg0: i32, %arg1: i32) -> (i32, i32, i32) {
    %c0_i32 = arith.constant 0 : i32
    %c0_i32_0 = arith.constant 0 : i32
    %c0_i32_1 = arith.constant 0 : i32
    return %arg0, %c0_i32, %c0_i32_0 : i32, i32, i32
  }
  func.func @transform_2(%arg0: i32, %arg1: i32) -> (i32, i32, i32) {
    %c0_i32 = arith.constant 0 : i32
    %c0_i32_0 = arith.constant 0 : i32
    %c0_i32_1 = arith.constant 0 : i32
    return %arg0, %c0_i32, %c0_i32_0 : i32, i32, i32
  }
  func.func @transform_3(%arg0: i32, %arg1: i32) -> (i32, i32, i32, i32) {
    %c0_i32 = arith.constant 0 : i32
    %c0_i32_0 = arith.constant 0 : i32
    %c0_i32_1 = arith.constant 0 : i32
    return %arg0, %arg1, %c0_i32, %c0_i32_0 : i32, i32, i32, i32
  }
  func.func @transform_4(%arg0: i32, %arg1: i32) -> (i32, i32, i32) {
    %c0_i32 = arith.constant 0 : i32
    %c0_i32_0 = arith.constant 0 : i32
    %c0_i32_1 = arith.constant 0 : i32
    return %arg1, %c0_i32, %c0_i32_0 : i32, i32, i32
  }
  func.func @transform_5(%arg0: i32, %arg1: i32) -> (i32, i32, i32) {
    %c0_i32 = arith.constant 0 : i32
    %c0_i32_0 = arith.constant 0 : i32
    %c0_i32_1 = arith.constant 0 : i32
    return %arg1, %c0_i32, %c0_i32_0 : i32, i32, i32
  }
  func.func @transform_6(%arg0: i32, %arg1: i32) -> (i32, i32, i32) {
    %c0_i32 = arith.constant 0 : i32
    %c0_i32_0 = arith.constant 0 : i32
    %c0_i32_1 = arith.constant 0 : i32
    return %arg1, %c0_i32, %c0_i32_0 : i32, i32, i32
  }
  func.func @transform_7(%arg0: i32, %arg1: i32) -> (i32, i32, i32) {
    %c0_i32 = arith.constant 0 : i32
    %c0_i32_0 = arith.constant 0 : i32
    %c0_i32_1 = arith.constant 0 : i32
    return %arg1, %c0_i32, %c0_i32_0 : i32, i32, i32
  }
  func.func @transform_8(%arg0: i32, %arg1: i32) -> (i32, i32, i32) {
    %c0_i32 = arith.constant 0 : i32
    %c0_i32_0 = arith.constant 0 : i32
    %c0_i32_1 = arith.constant 0 : i32
    return %arg1, %c0_i32, %c0_i32_0 : i32, i32, i32
  }
  func.func @transform_9(%arg0: i32, %arg1: i32) -> (i32, i32, i32) {
    %c0_i32 = arith.constant 0 : i32
    %c0_i32_0 = arith.constant 0 : i32
    %c0_i32_1 = arith.constant 0 : i32
    return %arg1, %c0_i32, %c0_i32_0 : i32, i32, i32
  }
  func.func @transform_10(%arg0: i32, %arg1: i32) -> (i32, i32, i32) {
    %c0_i32 = arith.constant 0 : i32
    %c0_i32_0 = arith.constant 0 : i32
    %c0_i32_1 = arith.constant 0 : i32
    return %arg1, %c0_i32, %c0_i32_0 : i32, i32, i32
  }
  func.func @transform_11(%arg0: i32, %arg1: i32) -> (i32, i32) {
    %c0_i32 = arith.constant 0 : i32
    %c0_i32_0 = arith.constant 0 : i32
    %c0_i32_1 = arith.constant 0 : i32
    return %c0_i32, %c0_i32_0 : i32, i32
  }
  func.func @transform_12(%arg0: i32, %arg1: i32) -> (i32, i32, i32) {
    %c0_i32 = arith.constant 0 : i32
    %c0_i32_0 = arith.constant 0 : i32
    %c0_i32_1 = arith.constant 0 : i32
    return %arg0, %c0_i32, %c0_i32_0 : i32, i32, i32
  }
  func.func @transform_13(%arg0: i32, %arg1: i32) -> (i32, i32, i32, i32) {
    %c0_i32 = arith.constant 0 : i32
    %c0_i32_0 = arith.constant 0 : i32
    %c0_i32_1 = arith.constant 0 : i32
    return %arg0, %arg1, %c0_i32, %c0_i32_0 : i32, i32, i32, i32
  }
}

</mosaic_0001>

<llo_original>
// kernel: tpu_custom_call.1
$region0: #{tpu_custom_call.1}
  #allocation0 [shape = 'u32[]', space=smem, size = 0x4, offset = 0x4, fixed_abs, tag = 'smem constant byte address 0x4 - core index']
  #allocation1 [shape = 'u32[72,128]{1,0:T(1,128)}', space=vmem, size = 0x9000, scoped, tag = 'internal scratch']
  %s0 = inlined_call_operand.vmem [shape: f32[2,8,32], index: 0, kind: input, shape index: {}]
  %s1 = inlined_call_operand.vmem [shape: f32[2,8,32], index: 1, kind: input, shape index: {}]
  %s2 = inlined_call_operand.vmem [shape: f32[2,8,32], index: 2, kind: input, shape index: {}]
  %s3 = inlined_call_operand.vmem [shape: f32[2,4,8,8], index: 3, kind: input, shape index: {}]
  %s4 = inlined_call_operand.vmem [shape: f32[4,32,8], index: 4, kind: input, shape index: {}]
  %s5 = inlined_call_operand.vmem [shape: f32[4,32,8], index: 5, kind: input, shape index: {}]
  %s6 = inlined_call_operand.vmem [shape: f32[4,32,8], index: 6, kind: input, shape index: {}]
  %s7 = inlined_call_operand.vmem [shape: f32[4,1,8], index: 7, kind: input, shape index: {}]
  %s8 = inlined_call_operand.vmem [shape: f32[4,1,8], index: 8, kind: input, shape index: {}]
  %s9 = inlined_call_operand.vmem [shape: f32[4,1,8], index: 9, kind: input, shape index: {}]
  %s10 = inlined_call_operand.vmem [shape: f32[4,8,32], index: 10, kind: input, shape index: {}]
  %s11 = inlined_call_operand.vmem [shape: f32[1,32], index: 11, kind: input, shape index: {}]
  %s12 = inlined_call_operand.hbm [shape: f32[2,8,32], index: 12, kind: output, shape index: {0}]
  %s13 = inlined_call_operand.hbm [shape: f32[2,4,8,8], index: 13, kind: output, shape index: {1}]
  %14 = xla_tuple %s12, %s13
  %s15 = sld [smem:[#allocation0]]
  $region97: #{tpu_custom_call.1} parent=0
    _
  %s17 = ssub.s32 1, %s15
  %s18 = scalar_select 0, %s17, %s15
  $region1: #{tpu_custom_call.1} parent=0
    #allocation2 [shape = 'u8[8192]{0}', space=vmem, size = 0x2000, scoped, tag = 'output window, operand 0']
    #allocation3 [shape = 's32[2]{0}', space=sflag, size = 0x8, scoped, tag = 'scoped memory for tpu_custom_call.1']
    #allocation4 [shape = 'u8[8192]{0}', space=vmem, size = 0x2000, scoped, tag = 'output window, operand 1']
    #allocation5 [shape = 's32[2]{0}', space=sflag, size = 0x8, scoped, tag = 'scoped memory for tpu_custom_call.1']
    %19 = vsyncpa [#allocation3], 0
    %s20 = scalar_lea.sflag [#allocation3], 1
    %21 = vsyncpa %s20, 0
    %22 = vsyncpa [#allocation5], 0
    %s23 = scalar_lea.sflag [#allocation5], 1
    %24 = vsyncpa %s23, 0
    loop: start=0, step=1, limit=10
    $region2: #{tpu_custom_call.1} parent=1 // loop_pre_header
      _
    $region3: #{tpu_custom_call.1} parent=1 // loop_header
      %s26 = sphi 0, %s30
      %p27 = scmp.ge.s32.totalorder %s26, 10
      %s33 = sphi 0, %s45
      %s34 = sphi 0, %s41
      %s35 = sphi 0, %s33
      %s36 = sphi 0, %s34
      %s37 = sphi 0, %s35
      %s38 = sphi 0, %s36
      %s48 = sphi 0, %s50
      %s51 = sphi 0, %s48
      %s52 = sphi 0, %s51
      %s68 = sphi 0, %s52
      %s74 = sphi 0, %s76
      %s77 = sphi 0, %s74
      %s78 = sphi 0, %s77
      %s94 = sphi 0, %s78
      %s100 = sphi 0, %s102
      %s103 = sphi 0, %s100
      %s104 = sphi 0, %s103
      %s120 = sphi 0, %s104
      %s128 = sphi 0, %s130
      %s131 = sphi 0, %s128
      %s132 = sphi 0, %s131
      %s148 = sphi 0, %s132
      %s154 = sphi 0, %s156
      %s157 = sphi 0, %s154
      %s158 = sphi 0, %s157
      %s174 = sphi 0, %s158
      %s180 = sphi 0, %s182
      %s183 = sphi 0, %s180
      %s184 = sphi 0, %s183
      %s200 = sphi 0, %s184
      %s206 = sphi 0, %s208
      %s209 = sphi 0, %s206
      %s210 = sphi 0, %s209
      %s226 = sphi 0, %s210
      %s232 = sphi 0, %s234
      %s235 = sphi 0, %s232
      %s236 = sphi 0, %s235
      %s252 = sphi 0, %s236
      %s258 = sphi 0, %s260
      %s261 = sphi 0, %s258
      %s262 = sphi 0, %s261
      %s278 = sphi 0, %s262
      %s284 = sphi 0, %s286
      %s287 = sphi 0, %s284
      %s288 = sphi 0, %s287
      %s304 = sphi 0, %s288
      %s310 = sphi 0, %s312
      %s313 = sphi 0, %s310
      %s314 = sphi 0, %s313
      %s330 = sphi 0, %s314
      %s334 = sphi 0, %s334
      %s336 = sphi 0, %s334
      %s337 = sphi 0, %s336
      %s351 = sphi 0, %s337
      %s357 = sphi 0, %s359
      %s360 = sphi 0, %s357
      %s361 = sphi 0, %s360
      %s377 = sphi 0, %s361
      %s385 = sphi 0, %s387
      %s388 = sphi 0, %s385
      %s389 = sphi 0, %s388
      %s405 = sphi 0, %s389
    $region4: #{tpu_custom_call.1} parent=1 // loop_header_branch
      %29 = sbr.rel (%p27) target = $region8
    $region5: #{tpu_custom_call.1} parent=1 // loop_body
      %s31 = ssub.s32 %s26, 1
      %s32 = ssub.s32 %s26, 2
      %s39 = sadd.s32 1, %s34
      %p40 = scmp.ge.s32.totalorder %s39, 4
      %s41 = scalar_select %p40, 0, %s39
      %s42 = sadd.s32 1, %s33
      %s43 = scalar_select %p40, %s42, %s33
      %p44 = scmp.ge.s32.totalorder %s43, 2
      %s45 = scalar_select %p44, 0, %s43
      %s46 = ssub.s32 %s33, %s45
      %p47 = scmp.eq.s32.totalorder %s46, 0
      %s49 = sadd.s32 %s48, 1
      %s50 = scalar_select %p47, %s48, %s49
      %p53 = pneg %p47
      %p54 = scmp.eq.s32.totalorder %s26, 7
      %p55 = por %p53, %p54
      %p56 = scmp.ne.s32.totalorder %s48, %s51
      %p57 = scmp.eq.s32.totalorder %s26, 0
      %p58 = por %p56, %p57
      %p59 = scmp.ne.s32.totalorder %s48, %s51
      %p60 = scmp.eq.s32.totalorder %s31, 7
      %p61 = por %p59, %p60
      %p62 = scmp.ne.s32.totalorder %s51, %s52
      %p63 = scmp.eq.s32.totalorder %s31, 0
      %p64 = por %p62, %p63
      %p65 = scmp.ne.s32.totalorder %s51, %s52
      %p66 = scmp.eq.s32.totalorder %s32, 7
      %p67 = por %p65, %p66
      %p69 = scmp.ne.s32.totalorder %s52, %s68
      %p70 = scmp.eq.s32.totalorder %s32, 0
      %p71 = por %p69, %p70
      %s72 = ssub.s32 %s33, %s45
      %p73 = scmp.eq.s32.totalorder %s72, 0
      %s75 = sadd.s32 %s74, 1
      %s76 = scalar_select %p73, %s74, %s75
      %p79 = pneg %p73
      %p80 = scmp.eq.s32.totalorder %s26, 7
      %p81 = por %p79, %p80
      %p82 = scmp.ne.s32.totalorder %s74, %s77
      %p83 = scmp.eq.s32.totalorder %s26, 0
      %p84 = por %p82, %p83
      %p85 = scmp.ne.s32.totalorder %s74, %s77
      %p86 = scmp.eq.s32.totalorder %s31, 7
      %p87 = por %p85, %p86
      %p88 = scmp.ne.s32.totalorder %s77, %s78
      %p89 = scmp.eq.s32.totalorder %s31, 0
      %p90 = por %p88, %p89
      %p91 = scmp.ne.s32.totalorder %s77, %s78
      %p92 = scmp.eq.s32.totalorder %s32, 7
      %p93 = por %p91, %p92
      %p95 = scmp.ne.s32.totalorder %s78, %s94
      %p96 = scmp.eq.s32.totalorder %s32, 0
      %p97 = por %p95, %p96
      %s98 = ssub.s32 %s33, %s45
      %p99 = scmp.eq.s32.totalorder %s98, 0
      %s101 = sadd.s32 %s100, 1
      %s102 = scalar_select %p99, %s100, %s101
      %p105 = pneg %p99
      %p106 = scmp.eq.s32.totalorder %s26, 7
      %p107 = por %p105, %p106
      %p108 = scmp.ne.s32.totalorder %s100, %s103
      %p109 = scmp.eq.s32.totalorder %s26, 0
      %p110 = por %p108, %p109
      %p111 = scmp.ne.s32.totalorder %s100, %s103
      %p112 = scmp.eq.s32.totalorder %s31, 7
      %p113 = por %p111, %p112
      %p114 = scmp.ne.s32.totalorder %s103, %s104
      %p115 = scmp.eq.s32.totalorder %s31, 0
      %p116 = por %p114, %p115
      %p117 = scmp.ne.s32.totalorder %s103, %s104
      %p118 = scmp.eq.s32.totalorder %s32, 7
      %p119 = por %p117, %p118
      %p121 = scmp.ne.s32.totalorder %s104, %s120
      %p122 = scmp.eq.s32.totalorder %s32, 0
      %p123 = por %p121, %p122
      %s124 = ssub.s32 %s33, %s45
      %s125 = ssub.s32 %s34, %s41
      %s126 = sor.u32 %s124, %s125
      %p127 = scmp.eq.s32.totalorder %s126, 0
      %s129 = sadd.s32 %s128, 1
      %s130 = scalar_select %p127, %s128, %s129
      %p133 = pneg %p127
      %p134 = scmp.eq.s32.totalorder %s26, 7
      %p135 = por %p133, %p134
      %p136 = scmp.ne.s32.totalorder %s128, %s131
      %p137 = scmp.eq.s32.totalorder %s26, 0
      %p138 = por %p136, %p137
      %p139 = scmp.ne.s32.totalorder %s128, %s131
      %p140 = scmp.eq.s32.totalorder %s31, 7
      %p141 = por %p139, %p140
      %p142 = scmp.ne.s32.totalorder %s131, %s132
      %p143 = scmp.eq.s32.totalorder %s31, 0
      %p144 = por %p142, %p143
      %p145 = scmp.ne.s32.totalorder %s131, %s132
      %p146 = scmp.eq.s32.totalorder %s32, 7
      %p147 = por %p145, %p146
      %p149 = scmp.ne.s32.totalorder %s132, %s148
      %p150 = scmp.eq.s32.totalorder %s32, 0
      %p151 = por %p149, %p150
      %s152 = ssub.s32 %s34, %s41
      %p153 = scmp.eq.s32.totalorder %s152, 0
      %s155 = sadd.s32 %s154, 1
      %s156 = scalar_select %p153, %s154, %s155
      %p159 = pneg %p153
      %p160 = scmp.eq.s32.totalorder %s26, 7
      %p161 = por %p159, %p160
      %p162 = scmp.ne.s32.totalorder %s154, %s157
      %p163 = scmp.eq.s32.totalorder %s26, 0
      %p164 = por %p162, %p163
      %p165 = scmp.ne.s32.totalorder %s154, %s157
      %p166 = scmp.eq.s32.totalorder %s31, 7
      %p167 = por %p165, %p166
      %p168 = scmp.ne.s32.totalorder %s157, %s158
      %p169 = scmp.eq.s32.totalorder %s31, 0
      %p170 = por %p168, %p169
      %p171 = scmp.ne.s32.totalorder %s157, %s158
      %p172 = scmp.eq.s32.totalorder %s32, 7
      %p173 = por %p171, %p172
      %p175 = scmp.ne.s32.totalorder %s158, %s174
      %p176 = scmp.eq.s32.totalorder %s32, 0
      %p177 = por %p175, %p176
      %s178 = ssub.s32 %s34, %s41
      %p179 = scmp.eq.s32.totalorder %s178, 0
      %s181 = sadd.s32 %s180, 1
      %s182 = scalar_select %p179, %s180, %s181
      %p185 = pneg %p179
      %p186 = scmp.eq.s32.totalorder %s26, 7
      %p187 = por %p185, %p186
      %p188 = scmp.ne.s32.totalorder %s180, %s183
      %p189 = scmp.eq.s32.totalorder %s26, 0
      %p190 = por %p188, %p189
      %p191 = scmp.ne.s32.totalorder %s180, %s183
      %p192 = scmp.eq.s32.totalorder %s31, 7
      %p193 = por %p191, %p192
      %p194 = scmp.ne.s32.totalorder %s183, %s184
      %p195 = scmp.eq.s32.totalorder %s31, 0
      %p196 = por %p194, %p195
      %p197 = scmp.ne.s32.totalorder %s183, %s184
      %p198 = scmp.eq.s32.totalorder %s32, 7
      %p199 = por %p197, %p198
      %p201 = scmp.ne.s32.totalorder %s184, %s200
      %p202 = scmp.eq.s32.totalorder %s32, 0
      %p203 = por %p201, %p202
      %s204 = ssub.s32 %s34, %s41
      %p205 = scmp.eq.s32.totalorder %s204, 0
      %s207 = sadd.s32 %s206, 1
      %s208 = scalar_select %p205, %s206, %s207
      %p211 = pneg %p205
      %p212 = scmp.eq.s32.totalorder %s26, 7
      %p213 = por %p211, %p212
      %p214 = scmp.ne.s32.totalorder %s206, %s209
      %p215 = scmp.eq.s32.totalorder %s26, 0
      %p216 = por %p214, %p215
      %p217 = scmp.ne.s32.totalorder %s206, %s209
      %p218 = scmp.eq.s32.totalorder %s31, 7
      %p219 = por %p217, %p218
      %p220 = scmp.ne.s32.totalorder %s209, %s210
      %p221 = scmp.eq.s32.totalorder %s31, 0
      %p222 = por %p220, %p221
      %p223 = scmp.ne.s32.totalorder %s209, %s210
      %p224 = scmp.eq.s32.totalorder %s32, 7
      %p225 = por %p223, %p224
      %p227 = scmp.ne.s32.totalorder %s210, %s226
      %p228 = scmp.eq.s32.totalorder %s32, 0
      %p229 = por %p227, %p228
      %s230 = ssub.s32 %s34, %s41
      %p231 = scmp.eq.s32.totalorder %s230, 0
      %s233 = sadd.s32 %s232, 1
      %s234 = scalar_select %p231, %s232, %s233
      %p237 = pneg %p231
      %p238 = scmp.eq.s32.totalorder %s26, 7
      %p239 = por %p237, %p238
      %p240 = scmp.ne.s32.totalorder %s232, %s235
      %p241 = scmp.eq.s32.totalorder %s26, 0
      %p242 = por %p240, %p241
      %p243 = scmp.ne.s32.totalorder %s232, %s235
      %p244 = scmp.eq.s32.totalorder %s31, 7
      %p245 = por %p243, %p244
      %p246 = scmp.ne.s32.totalorder %s235, %s236
      %p247 = scmp.eq.s32.totalorder %s31, 0
      %p248 = por %p246, %p247
      %p249 = scmp.ne.s32.totalorder %s235, %s236
      %p250 = scmp.eq.s32.totalorder %s32, 7
      %p251 = por %p249, %p250
      %p253 = scmp.ne.s32.totalorder %s236, %s252
      %p254 = scmp.eq.s32.totalorder %s32, 0
      %p255 = por %p253, %p254
      %s256 = ssub.s32 %s34, %s41
      %p257 = scmp.eq.s32.totalorder %s256, 0
      %s259 = sadd.s32 %s258, 1
      %s260 = scalar_select %p257, %s258, %s259
      %p263 = pneg %p257
      %p264 = scmp.eq.s32.totalorder %s26, 7
      %p265 = por %p263, %p264
      %p266 = scmp.ne.s32.totalorder %s258, %s261
      %p267 = scmp.eq.s32.totalorder %s26, 0
      %p268 = por %p266, %p267
      %p269 = scmp.ne.s32.totalorder %s258, %s261
      %p270 = scmp.eq.s32.totalorder %s31, 7
      %p271 = por %p269, %p270
      %p272 = scmp.ne.s32.totalorder %s261, %s262
      %p273 = scmp.eq.s32.totalorder %s31, 0
      %p274 = por %p272, %p273
      %p275 = scmp.ne.s32.totalorder %s261, %s262
      %p276 = scmp.eq.s32.totalorder %s32, 7
      %p277 = por %p275, %p276
      %p279 = scmp.ne.s32.totalorder %s262, %s278
      %p280 = scmp.eq.s32.totalorder %s32, 0
      %p281 = por %p279, %p280
      %s282 = ssub.s32 %s34, %s41
      %p283 = scmp.eq.s32.totalorder %s282, 0
      %s285 = sadd.s32 %s284, 1
      %s286 = scalar_select %p283, %s284, %s285
      %p289 = pneg %p283
      %p290 = scmp.eq.s32.totalorder %s26, 7
      %p291 = por %p289, %p290
      %p292 = scmp.ne.s32.totalorder %s284, %s287
      %p293 = scmp.eq.s32.totalorder %s26, 0
      %p294 = por %p292, %p293
      %p295 = scmp.ne.s32.totalorder %s284, %s287
      %p296 = scmp.eq.s32.totalorder %s31, 7
      %p297 = por %p295, %p296
      %p298 = scmp.ne.s32.totalorder %s287, %s288
      %p299 = scmp.eq.s32.totalorder %s31, 0
      %p300 = por %p298, %p299
      %p301 = scmp.ne.s32.totalorder %s287, %s288
      %p302 = scmp.eq.s32.totalorder %s32, 7
      %p303 = por %p301, %p302
      %p305 = scmp.ne.s32.totalorder %s288, %s304
      %p306 = scmp.eq.s32.totalorder %s32, 0
      %p307 = por %p305, %p306
      %s308 = ssub.s32 %s34, %s41
      %p309 = scmp.eq.s32.totalorder %s308, 0
      %s311 = sadd.s32 %s310, 1
      %s312 = scalar_select %p309, %s310, %s311
      %p315 = pneg %p309
      %p316 = scmp.eq.s32.totalorder %s26, 7
      %p317 = por %p315, %p316
      %p318 = scmp.ne.s32.totalorder %s310, %s313
      %p319 = scmp.eq.s32.totalorder %s26, 0
      %p320 = por %p318, %p319
      %p321 = scmp.ne.s32.totalorder %s310, %s313
      %p322 = scmp.eq.s32.totalorder %s31, 7
      %p323 = por %p321, %p322
      %p324 = scmp.ne.s32.totalorder %s313, %s314
      %p325 = scmp.eq.s32.totalorder %s31, 0
      %p326 = por %p324, %p325
      %p327 = scmp.ne.s32.totalorder %s313, %s314
      %p328 = scmp.eq.s32.totalorder %s32, 7
      %p329 = por %p327, %p328
      %p331 = scmp.ne.s32.totalorder %s314, %s330
      %p332 = scmp.eq.s32.totalorder %s32, 0
      %p333 = por %p331, %p332
      %s335 = sadd.s32 %s334, 1
      %p338 = scmp.eq.s32.totalorder %s26, 7
      %p339 = scmp.ne.s32.totalorder %s334, %s336
      %p340 = scmp.eq.s32.totalorder %s26, 0
      %p341 = por %p339, %p340
      %p342 = scmp.ne.s32.totalorder %s334, %s336
      %p343 = scmp.eq.s32.totalorder %s31, 7
      %p344 = por %p342, %p343
      %p345 = scmp.ne.s32.totalorder %s336, %s337
      %p346 = scmp.eq.s32.totalorder %s31, 0
      %p347 = por %p345, %p346
      %p348 = scmp.ne.s32.totalorder %s336, %s337
      %p349 = scmp.eq.s32.totalorder %s32, 7
      %p350 = por %p348, %p349
      %p352 = scmp.ne.s32.totalorder %s337, %s351
      %p353 = scmp.eq.s32.totalorder %s32, 0
      %p354 = por %p352, %p353
      %s355 = ssub.s32 %s33, %s45
      %p356 = scmp.eq.s32.totalorder %s355, 0
      %s358 = sadd.s32 %s357, 1
      %s359 = scalar_select %p356, %s357, %s358
      %p362 = pneg %p356
      %p363 = scmp.eq.s32.totalorder %s26, 7
      %p364 = por %p362, %p363
      %p365 = scmp.ne.s32.totalorder %s357, %s360
      %p366 = scmp.eq.s32.totalorder %s26, 0
      %p367 = por %p365, %p366
      %p368 = scmp.ne.s32.totalorder %s357, %s360
      %p369 = scmp.eq.s32.totalorder %s31, 7
      %p370 = por %p368, %p369
      %p371 = scmp.ne.s32.totalorder %s360, %s361
      %p372 = scmp.eq.s32.totalorder %s31, 0
      %p373 = por %p371, %p372
      %p374 = scmp.ne.s32.totalorder %s360, %s361
      %p375 = scmp.eq.s32.totalorder %s32, 7
      %p376 = por %p374, %p375
      %p378 = scmp.ne.s32.totalorder %s361, %s377
      %p379 = scmp.eq.s32.totalorder %s32, 0
      %p380 = por %p378, %p379
      %s381 = ssub.s32 %s33, %s45
      %s382 = ssub.s32 %s34, %s41
      %s383 = sor.u32 %s381, %s382
      %p384 = scmp.eq.s32.totalorder %s383, 0
      %s386 = sadd.s32 %s385, 1
      %s387 = scalar_select %p384, %s385, %s386
      %p390 = pneg %p384
      %p391 = scmp.eq.s32.totalorder %s26, 7
      %p392 = por %p390, %p391
      %p393 = scmp.ne.s32.totalorder %s385, %s388
      %p394 = scmp.eq.s32.totalorder %s26, 0
      %p395 = por %p393, %p394
      %p396 = scmp.ne.s32.totalorder %s385, %s388
      %p397 = scmp.eq.s32.totalorder %s31, 7
      %p398 = por %p396, %p397
      %p399 = scmp.ne.s32.totalorder %s388, %s389
      %p400 = scmp.eq.s32.totalorder %s31, 0
      %p401 = por %p399, %p400
      %p402 = scmp.ne.s32.totalorder %s388, %s389
      %p403 = scmp.eq.s32.totalorder %s32, 7
      %p404 = por %p402, %p403
      %p406 = scmp.ne.s32.totalorder %s389, %s405
      %p407 = scmp.eq.s32.totalorder %s32, 0
      %p408 = por %p406, %p407
      %p409 = scmp.le.s32.totalorder 1, %s26
      %p410 = scmp.lt.s32.totalorder %s26, 9
      %p411 = pnand %p409, %p410
      %p412 = pneg %p411
      // Predicated region
      $region9: #{tpu_custom_call.1} parent=5 // pred_check
        _
      $region10: #{tpu_custom_call.1} parent=5 // pred_check_branch
        %414 = sbr.rel (%p411) target = $region12
      $region11: #{tpu_custom_call.1} parent=5 // pred_region
        %s415 = ssub.s32 %s26, 1
        // Predicated region
        $region13: #{tpu_custom_call.1} parent=11 // pred_check
          %p416 = pneg %p347
        $region14: #{tpu_custom_call.1} parent=11 // pred_check_branch
          %418 = sbr.rel (%p416) target = $region16
        $region15: #{tpu_custom_call.1} parent=11 // pred_region
          _
        $region16: #{tpu_custom_call.1} parent=11 // pred_fallthru
          _
      $region12: #{tpu_custom_call.1} parent=5 // pred_fallthru
        _
      %p419 = scmp.lt.s32.totalorder %s26, 8
      // Predicated region
      $region17: #{tpu_custom_call.1} parent=5 // pred_check
        %p420 = pneg %p419
      $region18: #{tpu_custom_call.1} parent=5 // pred_check_branch
        %422 = sbr.rel (%p420) target = $region20
      $region19: #{tpu_custom_call.1} parent=5 // pred_region
        // Predicated region
        $region21: #{tpu_custom_call.1} parent=19 // pred_check
          %p423 = pneg %p58
        $region22: #{tpu_custom_call.1} parent=19 // pred_check_branch
          %425 = sbr.rel (%p423) target = $region24
        $region23: #{tpu_custom_call.1} parent=19 // pred_region
          %p426 = scmp.lt.s32.totalorder %s33, 1
          %s427 = scalar_select %p426, %s33, 1
          %s428 = smul.addr %s427, 8
          %s429 = scalar_lea.vmem %s0, %s428
        $region24: #{tpu_custom_call.1} parent=19 // pred_fallthru
          _
        // Predicated region
        $region25: #{tpu_custom_call.1} parent=19 // pred_check
          %p430 = pneg %p84
        $region26: #{tpu_custom_call.1} parent=19 // pred_check_branch
          %432 = sbr.rel (%p430) target = $region28
        $region27: #{tpu_custom_call.1} parent=19 // pred_region
          %p433 = scmp.lt.s32.totalorder %s33, 1
          %s434 = scalar_select %p433, %s33, 1
          %s435 = smul.addr %s434, 8
          %s436 = scalar_lea.vmem %s1, %s435
        $region28: #{tpu_custom_call.1} parent=19 // pred_fallthru
          _
        // Predicated region
        $region29: #{tpu_custom_call.1} parent=19 // pred_check
          %p437 = pneg %p110
        $region30: #{tpu_custom_call.1} parent=19 // pred_check_branch
          %439 = sbr.rel (%p437) target = $region32
        $region31: #{tpu_custom_call.1} parent=19 // pred_region
          %p440 = scmp.lt.s32.totalorder %s33, 1
          %s441 = scalar_select %p440, %s33, 1
          %s442 = smul.addr %s441, 8
          %s443 = scalar_lea.vmem %s2, %s442
        $region32: #{tpu_custom_call.1} parent=19 // pred_fallthru
          _
        // Predicated region
        $region33: #{tpu_custom_call.1} parent=19 // pred_check
          %p444 = pneg %p138
        $region34: #{tpu_custom_call.1} parent=19 // pred_check_branch
          %446 = sbr.rel (%p444) target = $region36
        $region35: #{tpu_custom_call.1} parent=19 // pred_region
          %p447 = scmp.lt.s32.totalorder %s33, 1
          %s448 = scalar_select %p447, %s33, 1
          %p449 = scmp.lt.s32.totalorder %s34, 3
          %s450 = scalar_select %p449, %s34, 3
          %s451 = smul.addr %s448, 4
          %s452 = sadd.s32 %s450, %s451
          %s453 = smul.addr %s452, 8
          %s454 = scalar_lea.vmem %s3, %s453
        $region36: #{tpu_custom_call.1} parent=19 // pred_fallthru
          _
        // Predicated region
        $region37: #{tpu_custom_call.1} parent=19 // pred_check
          %p455 = pneg %p164
        $region38: #{tpu_custom_call.1} parent=19 // pred_check_branch
          %457 = sbr.rel (%p455) target = $region40
        $region39: #{tpu_custom_call.1} parent=19 // pred_region
          %p458 = scmp.lt.s32.totalorder %s34, 3
          %s459 = scalar_select %p458, %s34, 3
          %s460 = smul.addr %s459, 4
          %s461 = smul.addr %s460, 8
          %s462 = scalar_lea.vmem %s4, %s461
        $region40: #{tpu_custom_call.1} parent=19 // pred_fallthru
          _
        // Predicated region
        $region41: #{tpu_custom_call.1} parent=19 // pred_check
          %p463 = pneg %p190
        $region42: #{tpu_custom_call.1} parent=19 // pred_check_branch
          %465 = sbr.rel (%p463) target = $region44
        $region43: #{tpu_custom_call.1} parent=19 // pred_region
          %p466 = scmp.lt.s32.totalorder %s34, 3
          %s467 = scalar_select %p466, %s34, 3
          %s468 = smul.addr %s467, 4
          %s469 = smul.addr %s468, 8
          %s470 = scalar_lea.vmem %s5, %s469
        $region44: #{tpu_custom_call.1} parent=19 // pred_fallthru
          _
        // Predicated region
        $region45: #{tpu_custom_call.1} parent=19 // pred_check
          %p471 = pneg %p216
        $region46: #{tpu_custom_call.1} parent=19 // pred_check_branch
          %473 = sbr.rel (%p471) target = $region48
        $region47: #{tpu_custom_call.1} parent=19 // pred_region
          %p474 = scmp.lt.s32.totalorder %s34, 3
          %s475 = scalar_select %p474, %s34, 3
          %s476 = smul.addr %s475, 4
          %s477 = smul.addr %s476, 8
          %s478 = scalar_lea.vmem %s6, %s477
        $region48: #{tpu_custom_call.1} parent=19 // pred_fallthru
          _
        // Predicated region
        $region49: #{tpu_custom_call.1} parent=19 // pred_check
          %p479 = pneg %p242
        $region50: #{tpu_custom_call.1} parent=19 // pred_check_branch
          %481 = sbr.rel (%p479) target = $region52
        $region51: #{tpu_custom_call.1} parent=19 // pred_region
          %p482 = scmp.lt.s32.totalorder %s34, 3
          %s483 = scalar_select %p482, %s34, 3
          %s484 = scalar_lea.vmem %s7, %s483
        $region52: #{tpu_custom_call.1} parent=19 // pred_fallthru
          _
        // Predicated region
        $region53: #{tpu_custom_call.1} parent=19 // pred_check
          %p485 = pneg %p268
        $region54: #{tpu_custom_call.1} parent=19 // pred_check_branch
          %487 = sbr.rel (%p485) target = $region56
        $region55: #{tpu_custom_call.1} parent=19 // pred_region
          %p488 = scmp.lt.s32.totalorder %s34, 3
          %s489 = scalar_select %p488, %s34, 3
          %s490 = scalar_lea.vmem %s8, %s489
        $region56: #{tpu_custom_call.1} parent=19 // pred_fallthru
          _
        // Predicated region
        $region57: #{tpu_custom_call.1} parent=19 // pred_check
          %p491 = pneg %p294
        $region58: #{tpu_custom_call.1} parent=19 // pred_check_branch
          %493 = sbr.rel (%p491) target = $region60
        $region59: #{tpu_custom_call.1} parent=19 // pred_region
          %p494 = scmp.lt.s32.totalorder %s34, 3
          %s495 = scalar_select %p494, %s34, 3
          %s496 = scalar_lea.vmem %s9, %s495
        $region60: #{tpu_custom_call.1} parent=19 // pred_fallthru
          _
        // Predicated region
        $region61: #{tpu_custom_call.1} parent=19 // pred_check
          %p497 = pneg %p320
        $region62: #{tpu_custom_call.1} parent=19 // pred_check_branch
          %499 = sbr.rel (%p497) target = $region64
        $region63: #{tpu_custom_call.1} parent=19 // pred_region
          %p500 = scmp.lt.s32.totalorder %s34, 3
          %s501 = scalar_select %p500, %s34, 3
          %s502 = smul.addr %s501, 8
          %s503 = scalar_lea.vmem %s10, %s502
        $region64: #{tpu_custom_call.1} parent=19 // pred_fallthru
          _
      $region20: #{tpu_custom_call.1} parent=5 // pred_fallthru
        _
      %p504 = scmp.le.s32.totalorder 1, %s26
      %p505 = scmp.lt.s32.totalorder %s26, 9
      %p506 = pnand %p504, %p505
      %p507 = pneg %p506
      // Predicated region
      $region65: #{tpu_custom_call.1} parent=5 // pred_check
        _
      $region66: #{tpu_custom_call.1} parent=5 // pred_check_branch
        %509 = sbr.rel (%p506) target = $region68
      $region67: #{tpu_custom_call.1} parent=5 // pred_region
        %s510 = ssub.s32 %s26, 1
        %p511 = scmp.lt.s32.totalorder %s35, 1
        %s512 = scalar_select %p511, %s35, 1
        %s513 = smul.addr %s512, 8
        %s514 = scalar_lea.vmem %s0, %s513
        %p515 = pneg %p64
        %p516 = pneg %p61
        %p517 = scmp.lt.s32.totalorder %s35, 1
        %s518 = scalar_select %p517, %s35, 1
        %s519 = smul.addr %s518, 8
        %s520 = scalar_lea.vmem %s1, %s519
        %p521 = pneg %p90
        %p522 = pneg %p87
        %p523 = scmp.lt.s32.totalorder %s35, 1
        %s524 = scalar_select %p523, %s35, 1
        %s525 = smul.addr %s524, 8
        %s526 = scalar_lea.vmem %s2, %s525
        %p527 = pneg %p116
        %p528 = pneg %p113
        %p529 = scmp.lt.s32.totalorder %s35, 1
        %s530 = scalar_select %p529, %s35, 1
        %p531 = scmp.lt.s32.totalorder %s36, 3
        %s532 = scalar_select %p531, %s36, 3
        %s533 = smul.addr %s530, 4
        %s534 = sadd.s32 %s532, %s533
        %s535 = smul.addr %s534, 8
        %s536 = scalar_lea.vmem %s3, %s535
        %p537 = pneg %p144
        %p538 = pneg %p141
        %p539 = scmp.lt.s32.totalorder %s36, 3
        %s540 = scalar_select %p539, %s36, 3
        %s541 = smul.addr %s540, 4
        %s542 = smul.addr %s541, 8
        %s543 = scalar_lea.vmem %s4, %s542
        %p544 = pneg %p170
        %p545 = pneg %p167
        %p546 = scmp.lt.s32.totalorder %s36, 3
        %s547 = scalar_select %p546, %s36, 3
        %s548 = smul.addr %s547, 4
        %s549 = smul.addr %s548, 8
        %s550 = scalar_lea.vmem %s5, %s549
        %p551 = pneg %p196
        %p552 = pneg %p193
        %p553 = scmp.lt.s32.totalorder %s36, 3
        %s554 = scalar_select %p553, %s36, 3
        %s555 = smul.addr %s554, 4
        %s556 = smul.addr %s555, 8
        %s557 = scalar_lea.vmem %s6, %s556
        %p558 = pneg %p222
        %p559 = pneg %p219
        %p560 = scmp.lt.s32.totalorder %s36, 3
        %s561 = scalar_select %p560, %s36, 3
        %s562 = scalar_lea.vmem %s7, %s561
        %p563 = pneg %p248
        %p564 = pneg %p245
        %p565 = scmp.lt.s32.totalorder %s36, 3
        %s566 = scalar_select %p565, %s36, 3
        %s567 = scalar_lea.vmem %s8, %s566
        %p568 = pneg %p274
        %p569 = pneg %p271
        %p570 = scmp.lt.s32.totalorder %s36, 3
        %s571 = scalar_select %p570, %s36, 3
        %s572 = scalar_lea.vmem %s9, %s571
        %p573 = pneg %p300
        %p574 = pneg %p297
        %p575 = scmp.lt.s32.totalorder %s36, 3
        %s576 = scalar_select %p575, %s36, 3
        %s577 = smul.addr %s576, 8
        %s578 = scalar_lea.vmem %s10, %s577
        %p579 = pneg %p326
        %p580 = pneg %p323
        %p581 = pneg %p347
        %p582 = pneg %p344
        %p583 = pneg %p373
        %p584 = pneg %p370
        %s585 = sand.u32 %s360, 1
        %s586 = scalar_lea.sflag [#allocation3], %s585
        %s587 = sand.u32 %s360, 1
        %s588 = smul.addr %s587, 8
        %s589 = scalar_lea.vmem [#allocation2], %s588
        %p590 = pneg %p401
        %p591 = pneg %p398
        %s592 = sand.u32 %s388, 1
        %s593 = scalar_lea.sflag [#allocation5], %s592
        %s594 = sand.u32 %s388, 1
        %s595 = smul.addr %s594, 8
        %s596 = scalar_lea.vmem [#allocation4], %s595
        %p597 = scmp.lt.s32.totalorder %s35, 1
        %s598 = scalar_select %p597, %s35, 1
        %s599 = smul.addr %s598, 8
        %s600 = scalar_lea.vmem %s0, %s599
        %p601 = scmp.lt.s32.totalorder %s35, 1
        %s602 = scalar_select %p601, %s35, 1
        %s603 = smul.addr %s602, 8
        %s604 = scalar_lea.vmem %s1, %s603
        %p605 = scmp.lt.s32.totalorder %s35, 1
        %s606 = scalar_select %p605, %s35, 1
        %s607 = smul.addr %s606, 8
        %s608 = scalar_lea.vmem %s2, %s607
        %p609 = scmp.lt.s32.totalorder %s35, 1
        %s610 = scalar_select %p609, %s35, 1
        %p611 = scmp.lt.s32.totalorder %s36, 3
        %s612 = scalar_select %p611, %s36, 3
        %s613 = smul.addr %s610, 4
        %s614 = sadd.s32 %s612, %s613
        %s615 = smul.addr %s614, 8
        %s616 = scalar_lea.vmem %s3, %s615
        %p617 = scmp.lt.s32.totalorder %s36, 3
        %s618 = scalar_select %p617, %s36, 3
        %s619 = smul.addr %s618, 4
        %s620 = smul.addr %s619, 8
        %s621 = scalar_lea.vmem %s4, %s620
        %p622 = scmp.lt.s32.totalorder %s36, 3
        %s623 = scalar_select %p622, %s36, 3
        %s624 = smul.addr %s623, 4
        %s625 = smul.addr %s624, 8
        %s626 = scalar_lea.vmem %s5, %s625
        %p627 = scmp.lt.s32.totalorder %s36, 3
        %s628 = scalar_select %p627, %s36, 3
        %s629 = smul.addr %s628, 4
        %s630 = smul.addr %s629, 8
        %s631 = scalar_lea.vmem %s6, %s630
        %p632 = scmp.lt.s32.totalorder %s36, 3
        %s633 = scalar_select %p632, %s36, 3
        %s634 = scalar_lea.vmem %s7, %s633
        %p635 = scmp.lt.s32.totalorder %s36, 3
        %s636 = scalar_select %p635, %s36, 3
        %s637 = scalar_lea.vmem %s8, %s636
        %p638 = scmp.lt.s32.totalorder %s36, 3
        %s639 = scalar_select %p638, %s36, 3
        %s640 = scalar_lea.vmem %s9, %s639
        %p641 = scmp.lt.s32.totalorder %s36, 3
        %s642 = scalar_select %p641, %s36, 3
        %s643 = smul.addr %s642, 8
        %s644 = scalar_lea.vmem %s10, %s643
        %v645 = vld [vmem:[%s600] sm:$0xff]
        %v646 = vld [vmem:[%s604] sm:$0xff]
        %v647 = vld [vmem:[%s608] sm:$0xff]
        %v648 = vld [vmem:[%s621] sm:$0xff]
        %v649 = vld [vmem:[%s621 + $0x8] sm:$0xff]
        %v650 = vld [vmem:[%s621 + $0x10] sm:$0xff]
        %v651 = vld [vmem:[%s621 + $0x18] sm:$0xff]
        %v652 = vld [vmem:[%s634] sm:$0x1]
        %v654 = vperm.slane %v652, 0
        %vm656 = vcmask 261120
        %v658 = vsel %vm656, %v645, 0
        %660 = vmatpush.msra.mxu0 0.0
        %661 = vmatpush.msra.mxu0 0.0
        %662 = vmatpush.msra.mxu0 0.0
        %663 = vmatpush.msra.mxu0 0.0
        %664 = vmatpush.msra.mxu0 0.0
        %665 = vmatpush.msra.mxu0 0.0
        %666 = vmatpush.msra.mxu0 0.0
        %667 = vmatpush.msra.mxu0 0.0
        %668 = vmatpush.msra.mxu0 0.0
        %669 = vmatpush.msra.mxu0 0.0
        %670 = vmatpush.msra.mxu0 0.0
        %671 = vmatpush.msra.mxu0 0.0
        %672 = vmatpush.msra.mxu0 %v651
        %673 = vmatpush.msra.mxu0 %v650
        %674 = vmatpush.msra.mxu0 %v649
        %675 = vmatpush.msra.mxu0 %v648
        %676 = vmatmul.f32.gmra.mxu0 %v658
        %v677 = vpop.f32.mrf.mxu0
        %v678 = vadd.f32 %v654, %v677
        %679 = vdwg.mxu0
        %v680 = vld [vmem:[%s626] sm:$0xff]
        %v681 = vld [vmem:[%s626 + $0x8] sm:$0xff]
        %v682 = vld [vmem:[%s626 + $0x10] sm:$0xff]
        %v683 = vld [vmem:[%s626 + $0x18] sm:$0xff]
        %v684 = vld [vmem:[%s637] sm:$0x1]
        %v686 = vperm.slane %v684, 0
        %v689 = vsel %vm656, %v646, 0
        %691 = vmatpush.msra.mxu0 0.0
        %692 = vmatpush.msra.mxu0 0.0
        %693 = vmatpush.msra.mxu0 0.0
        %694 = vmatpush.msra.mxu0 0.0
        %695 = vmatpush.msra.mxu0 0.0
        %696 = vmatpush.msra.mxu0 0.0
        %697 = vmatpush.msra.mxu0 0.0
        %698 = vmatpush.msra.mxu0 0.0
        %699 = vmatpush.msra.mxu0 0.0
        %700 = vmatpush.msra.mxu0 0.0
        %701 = vmatpush.msra.mxu0 0.0
        %702 = vmatpush.msra.mxu0 0.0
        %703 = vmatpush.msra.mxu0 %v683
        %704 = vmatpush.msra.mxu0 %v682
        %705 = vmatpush.msra.mxu0 %v681
        %706 = vmatpush.msra.mxu0 %v680
        %707 = vmatmul.f32.gmra.mxu0 %v689
        %v708 = vpop.f32.mrf.mxu0
        %v709 = vadd.f32 %v686, %v708
        %710 = vdwg.mxu0
        %v711 = vld [vmem:[%s631] sm:$0xff]
        %v712 = vld [vmem:[%s631 + $0x8] sm:$0xff]
        %v713 = vld [vmem:[%s631 + $0x10] sm:$0xff]
        %v714 = vld [vmem:[%s631 + $0x18] sm:$0xff]
        %v715 = vld [vmem:[%s640] sm:$0x1]
        %v717 = vperm.slane %v715, 0
        %v720 = vsel %vm656, %v647, 0
        %722 = vmatpush.msra.mxu0 0.0
        %723 = vmatpush.msra.mxu0 0.0
        %724 = vmatpush.msra.mxu0 0.0
        %725 = vmatpush.msra.mxu0 0.0
        %726 = vmatpush.msra.mxu0 0.0
        %727 = vmatpush.msra.mxu0 0.0
        %728 = vmatpush.msra.mxu0 0.0
        %729 = vmatpush.msra.mxu0 0.0
        %730 = vmatpush.msra.mxu0 0.0
        %731 = vmatpush.msra.mxu0 0.0
        %732 = vmatpush.msra.mxu0 0.0
        %733 = vmatpush.msra.mxu0 0.0
        %734 = vmatpush.msra.mxu0 %v714
        %735 = vmatpush.msra.mxu0 %v713
        %736 = vmatpush.msra.mxu0 %v712
        %737 = vmatpush.msra.mxu0 %v711
        %738 = vmatmul.f32.gmra.mxu0 %v720
        %v739 = vpop.f32.mrf.mxu0
        %v740 = vadd.f32 %v717, %v739
        %741 = vdwg.mxu0
        %v742 = vld [vmem:[%s616] sm:$0xff]
        %vm743 = vcmask 64512
        %v745 = vsel %vm743, %v678, 0
        %v748 = vsel %vm743, %v709, 0
        %750 = vmatpush.xpose.msra.mxu0 0.0
        %751 = vmatpush.xpose.msra.mxu0 0.0
        %752 = vmatpush.xpose.msra.mxu0 0.0
        %753 = vmatpush.xpose.msra.mxu0 0.0
        %754 = vmatpush.xpose.msra.mxu0 0.0
        %755 = vmatpush.xpose.msra.mxu0 0.0
        %756 = vmatpush.xpose.msra.mxu0 0.0
        %757 = vmatpush.xpose.msra.mxu0 0.0
        %758 = vmatpush.xpose.msra.mxu0 0.0
        %759 = vmatpush.xpose.msra.mxu0 0.0
        %760 = vmatpush.xpose.msra.mxu0 0.0
        %761 = vmatpush.xpose.msra.mxu0 0.0
        %762 = vmatpush.xpose.msra.mxu0 0.0
        %763 = vmatpush.xpose.msra.mxu0 0.0
        %764 = vmatpush.xpose.msra.mxu0 0.0
        %765 = vmatpush.xpose.msra.mxu0 %v748
        %766 = vmatmul.f32.gmra.mxu0 %v745
        %v767 = vpop.f32.mrf.mxu0
        %v768 = vadd.f32 %v742, %v767
        %769 = vdwg.mxu0
        %v770 = vsel %vm743, %v768, -inf
        %771 = vmax.xlane.f32.xlu0 %v770
        %v772 = vpop.xlane.xlu0 %771
        %v773 = vsub.f32 %v768, %v772
        %v774 = vmul.f32 %v773, 1.442695
        %v775 = vpow.pop %v774
        %v776 = vsel %vm743, %v775, 0.0
        %777 = vadd.xlane.f32.xlu0 %v776
        %v778 = vpop.xlane.xlu0 %777
        %v779 = vrcp.pop %v778
        %v780 = vmul.f32 %v778, %v779
        %v781 = vsub.f32 1.0, %v780
        %v782 = vmul.f32 %v779, %v781
        %v783 = vadd.f32 %v779, %v782
        %vm784 = vweird.f32 %v778
        %vm785 = vweird.f32 %v779
        %vm786 = vmor %vm784, %vm785
        %v787 = vsel %vm786, %v779, %v783
        %v788 = vand.u32 2147483647, %v778
        %vm789 = vcmp.eq.f32.partialorder %v788, 8.507059e+37
        %v790 = vand.u32 %v778, 2147483648
        %v791 = vor.u32 1.1754944e-38, %v790
        %v792 = vsel %vm789, %v791, %v787
        %v793 = vmul.f32 %v775, %v792
        %794 = vst.msk [vmem:[%s596] sm:$0xff] %vm743, %v793
        %v796 = vsel %vm743, %v793, 0
        %798 = vmatpush.msra.mxu0 0.0
        %799 = vmatpush.msra.mxu0 0.0
        %800 = vmatpush.msra.mxu0 0.0
        %801 = vmatpush.msra.mxu0 0.0
        %802 = vmatpush.msra.mxu0 0.0
        %803 = vmatpush.msra.mxu0 0.0
        %804 = vmatpush.msra.mxu0 0.0
        %805 = vmatpush.msra.mxu0 0.0
        %806 = vmatpush.msra.mxu0 0.0
        %807 = vmatpush.msra.mxu0 0.0
        %808 = vmatpush.msra.mxu0 0.0
        %809 = vmatpush.msra.mxu0 0.0
        %810 = vmatpush.msra.mxu0 0.0
        %811 = vmatpush.msra.mxu0 0.0
        %812 = vmatpush.msra.mxu0 0.0
        %813 = vmatpush.msra.mxu0 %v740
        %814 = vmatmul.f32.gmra.mxu0 %v796
        %v815 = vpop.f32.mrf.mxu0
        %v816 = vadd.f32 0.0, %v815
        %817 = vdwg.mxu0
        %v818 = vld [vmem:[%s644] sm:$0xff]
        %v820 = vsel %vm743, %v816, 0
        %822 = vmatpush.msra.mxu0 0.0
        %823 = vmatpush.msra.mxu0 0.0
        %824 = vmatpush.msra.mxu0 0.0
        %825 = vmatpush.msra.mxu0 0.0
        %826 = vmatpush.msra.mxu0 0.0
        %827 = vmatpush.msra.mxu0 0.0
        %828 = vmatpush.msra.mxu0 0.0
        %829 = vmatpush.msra.mxu0 0.0
        %830 = vmatpush.msra.mxu0 0.0
        %831 = vmatpush.msra.mxu0 0.0
        %832 = vmatpush.msra.mxu0 0.0
        %833 = vmatpush.msra.mxu0 0.0
        %834 = vmatpush.msra.mxu0 0.0
        %835 = vmatpush.msra.mxu0 0.0
        %836 = vmatpush.msra.mxu0 0.0
        %837 = vmatpush.msra.mxu0 %v818
        %838 = vmatmul.f32.gmra.mxu0 %v820
        %v839 = vpop.f32.mrf.mxu0
        %v840 = vadd.f32 0.0, %v839
        %841 = vdwg.mxu0
        %p842 = scmp.eq.s32.totalorder %s36, 0
        // Predicated region
        $region69: #{tpu_custom_call.1} parent=67 // pred_check
          %p843 = pneg %p842
        $region70: #{tpu_custom_call.1} parent=67 // pred_check_branch
          %845 = sbr.rel (%p843) target = $region72
        $region71: #{tpu_custom_call.1} parent=67 // pred_region
          %v846 = vld [vmem:[%s11] sm:$0x1]
          %v848 = vperm.slane %v846, 0
          %v850 = vadd.f32 %v840, %v848
          %851 = vst.msk [vmem:[%s589] sm:$0xff] %vm656, %v850
        $region72: #{tpu_custom_call.1} parent=67 // pred_fallthru
          _
        %p852 = scmp.ne.s32.totalorder %s36, 0
        // Predicated region
        $region73: #{tpu_custom_call.1} parent=67 // pred_check
          %p853 = pneg %p852
        $region74: #{tpu_custom_call.1} parent=67 // pred_check_branch
          %855 = sbr.rel (%p853) target = $region76
        $region75: #{tpu_custom_call.1} parent=67 // pred_region
          %v856 = vld [vmem:[%s589] sm:$0xff]
          %v857 = vadd.f32 %v856, %v840
          %858 = vst.msk [vmem:[%s589] sm:$0xff] %vm656, %v857
        $region76: #{tpu_custom_call.1} parent=67 // pred_fallthru
          _
        %s859 = sand.u32 %s360, 1
        %s860 = scalar_lea.sflag [#allocation3], %s859
        %s861 = sand.u32 %s360, 1
        %s862 = smul.addr %s861, 8
        %s863 = scalar_lea.vmem [#allocation2], %s862
        %s864 = sand.u32 %s388, 1
        %s865 = scalar_lea.sflag [#allocation5], %s864
        %s866 = sand.u32 %s388, 1
        %s867 = smul.addr %s866, 8
        %s868 = scalar_lea.vmem [#allocation4], %s867
        // Predicated region
        $region77: #{tpu_custom_call.1} parent=67 // pred_check
          %p869 = pneg %p370
        $region78: #{tpu_custom_call.1} parent=67 // pred_check_branch
          %871 = sbr.rel (%p869) target = $region80
        $region79: #{tpu_custom_call.1} parent=67 // pred_region
          %873 = vsyncadd %s860, 0
          %s874 = smul.addr %s35, 8
          %s875 = scalar_lea.hbm %s12, %s874
          %s877 = sshll.u32 %s863, 4
          %s878 = int_to_ptr.vmem [resolvable:$true] %s877
          %s879 = sshll.u32 %s875, 4
          %s880 = int_to_ptr.hbm [resolvable:$true] %s879
          %882 = dma.vmem_to_hbm [thread:$0]  %s878, 128, %s880, %s860
        $region80: #{tpu_custom_call.1} parent=67 // pred_fallthru
          _
        // Predicated region
        $region81: #{tpu_custom_call.1} parent=67 // pred_check
          %p883 = pneg %p398
        $region82: #{tpu_custom_call.1} parent=67 // pred_check_branch
          %885 = sbr.rel (%p883) target = $region84
        $region83: #{tpu_custom_call.1} parent=67 // pred_region
          %887 = vsyncadd %s865, 0
          %s888 = smul.addr %s35, 4
          %s889 = sadd.s32 %s36, %s888
          %s890 = smul.addr %s889, 8
          %s891 = scalar_lea.hbm %s13, %s890
          %s893 = sshll.u32 %s868, 4
          %s894 = int_to_ptr.vmem [resolvable:$true] %s893
          %s895 = sshll.u32 %s891, 4
          %s896 = int_to_ptr.hbm [resolvable:$true] %s895
          %898 = dma.vmem_to_hbm [thread:$0]  %s894, 128, %s896, %s865
        $region84: #{tpu_custom_call.1} parent=67 // pred_fallthru
          _
      $region68: #{tpu_custom_call.1} parent=5 // pred_fallthru
        _
      %p899 = scmp.le.s32.totalorder 2, %s26
      // Predicated region
      $region85: #{tpu_custom_call.1} parent=5 // pred_check
        %p900 = pneg %p899
      $region86: #{tpu_custom_call.1} parent=5 // pred_check_branch
        %902 = sbr.rel (%p900) target = $region88
      $region87: #{tpu_custom_call.1} parent=5 // pred_region
        %s903 = ssub.s32 %s26, 2
        // Predicated region
        $region89: #{tpu_custom_call.1} parent=87 // pred_check
          %p904 = pneg %p376
        $region90: #{tpu_custom_call.1} parent=87 // pred_check_branch
          %906 = sbr.rel (%p904) target = $region92
        $region91: #{tpu_custom_call.1} parent=87 // pred_region
          %s907 = sand.u32 %s361, 1
          %s908 = scalar_lea.sflag [#allocation3], %s907
          %s909 = sand.u32 %s361, 1
          %s910 = smul.addr %s909, 8
          %s911 = scalar_lea.vmem [#allocation2], %s910
          %913 = dma.done %s908, 128
        $region92: #{tpu_custom_call.1} parent=87 // pred_fallthru
          _
        // Predicated region
        $region93: #{tpu_custom_call.1} parent=87 // pred_check
          %p914 = pneg %p404
        $region94: #{tpu_custom_call.1} parent=87 // pred_check_branch
          %916 = sbr.rel (%p914) target = $region96
        $region95: #{tpu_custom_call.1} parent=87 // pred_region
          %s917 = sand.u32 %s389, 1
          %s918 = scalar_lea.sflag [#allocation5], %s917
          %s919 = sand.u32 %s389, 1
          %s920 = smul.addr %s919, 8
          %s921 = scalar_lea.vmem [#allocation4], %s920
          %923 = dma.done %s918, 128
        $region96: #{tpu_custom_call.1} parent=87 // pred_fallthru
          _
      $region88: #{tpu_custom_call.1} parent=5 // pred_fallthru
        _
    $region6: #{tpu_custom_call.1} parent=1 // loop_footer
      %s30 = sadd.s32 1, %s26
    $region7: #{tpu_custom_call.1} parent=1 // loop_footer_branch
      %25 = sbr.rel target = $region3
    $region8: #{tpu_custom_call.1} parent=1 // loop_exit
      _
    %924 = vsyncpa [#allocation3], 1
    %s925 = scalar_lea.sflag [#allocation3], 1
    %926 = vsyncpa %s925, 1
    %927 = vsyncpa [#allocation5], 1
    %s928 = scalar_lea.sflag [#allocation5], 1
    %929 = vsyncpa %s928, 1

</llo_original>
